<compile_context>
chip_gen: v6e
topology: v6e:2x2x1
jax: 0.10.0
libtpu: 0.0.40
codegen_flags: <defaults>
</compile_context>

<pallas_src>
import jax
import jax.numpy as jnp
from jax.experimental import pallas as pl
from jax.experimental.pallas import tpu as pltpu

_SMALL_BYPASS_BYTES = 256 << 10        # below this, fused XLA beats a kernel launch
_TARGET_BLOCK_BYTES = 2 << 20          # ~2 MiB input block: ~85% of HBM roofline
_MIN_BLOCK_BYTES = 1 << 20             # don't shrink below this to manufacture steps
_DEFAULT_SCOPED_VMEM_BYTES = 16 << 20  # conservative scoped-VMEM default (v5e)
_VMEM_LIMIT_CAP_BYTES = 64 << 20       # stay inside v7x physical VMEM


def _unit_sphere_solve_kernel(x_ref, o_ref):
    """problem.solve: project each batch row onto the unit L2 sphere."""
    x = x_ref[...].astype(jnp.float32)               # (tb, D)  VPU-width loads
    sq = jnp.sum(x * x, axis=-1, keepdims=True)      # (tb, 1)  XLU row reduction
    inv_norm = jax.lax.rsqrt(sq)                     # EUP rsqrt (free slot)
    o_ref[...] = (x * inv_norm).astype(o_ref.dtype)  # VPU scale, masked tail store


def _tensorcores_per_chip():
    """Best-effort TC-per-chip query; defaults to 1 (no megacore tb cap)."""
    try:
        info = pltpu.get_tpu_info()
        for name in ("num_cores", "num_tensorcores", "tensor_cores_per_chip",
                     "cores_per_chip", "num_cores_per_chip"):
            n = getattr(info, name, None)
            if isinstance(n, int) and n > 0:
                return n
    except Exception:
        pass
    try:
        kind = jax.devices()[0].device_kind.lower()
        if ("v7" in kind) or ("v4" in kind) or ("v5p" in kind):
            return 2
    except Exception:
        pass
    return 1


def _derive_tb(B, D, itemsize, sub, n_tc):
    """Capacity-first batch tile, then (multi-TC only) balanced even steps."""
    target = _TARGET_BLOCK_BYTES
    if itemsize < 4:
        # sub-32-bit inputs upcast to f32 in-kernel: keep v5e's 16 MiB scoped
        # default comfortable (2x in dbuf + 2x out dbuf + f32 temps).
        target //= 2
    row_bytes = max(D * itemsize, 1)

    tb = (target // row_bytes) // sub * sub
    tb = max(tb, sub)
    if tb >= B:
        tb = B  # full-extent second-to-last dim is always a legal block

    if n_tc >= 2 and B > sub:
        # v7x megacore: even, balanced step count so neither TC idles on a
        # tiny remainder block; never shrink below ~1 MiB per block.
        steps = pl.cdiv(B, tb)
        want = steps if steps % 2 == 0 else steps + 1
        if want >= 2:
            tb_bal = -(-B // want)                 # ceil(B / want)
            tb_bal = -(-tb_bal // sub) * sub       # round up to sublane multiple
            if sub <= tb_bal < B and tb_bal * row_bytes >= _MIN_BLOCK_BYTES:
                tb = min(tb, tb_bal) if tb != B else tb_bal
    return tb


def declarative_layer_forward(x, *, tb=None, force_kernel=False, donate_input=False):
    """DeclarativeLayer(problem).forward(x) == problem.solve(x)[0].clone().

    x: (B, D) float array.  Returns y with the same shape/dtype, where
    y[b] = x[b] / ||x[b]||_2.
    """
    B, D = x.shape
    itemsize = jnp.dtype(x.dtype).itemsize

    # --- small-problem bypass: kernel launch overhead dwarfs the work --------
    if not force_kernel and B * D * itemsize < _SMALL_BYPASS_BYTES:
        xf = x.astype(jnp.float32)
        sq = jnp.sum(xf * xf, axis=-1, keepdims=True)
        return (xf * jax.lax.rsqrt(sq)).astype(x.dtype)

    # --- batch tile derivation -------------------------------------------------
    sub = 8 if itemsize >= 4 else (16 if itemsize == 2 else 32)  # sublane packing
    n_tc = _tensorcores_per_chip()
    if tb is None:
        tb = _derive_tb(B, D, itemsize, sub, n_tc)
    tb = min(tb, B)
    # tb is a multiple of `sub` or equal to the full batch dim -> legal block.
    # Last block dim is the full D, which is legal for any D (masked tail ops).

    # --- VMEM headroom: raise scoped limit only when a block actually needs it
    est_vmem = 4 * tb * D * itemsize + 2 * tb * D * 4  # in/out dbuf + f32 temps
    cp_kwargs = dict(dimension_semantics=("parallel",))
    if est_vmem > _DEFAULT_SCOPED_VMEM_BYTES:
        cp_kwargs["vmem_limit_bytes"] = int(
            min(est_vmem + (2 << 20), _VMEM_LIMIT_CAP_BYTES))

    call_kwargs = {}
    if donate_input:
        # shapes/dtypes match exactly now (no pad/slice), so aliasing is legal
        call_kwargs["input_output_aliases"] = {0: 0}

    grid = (pl.cdiv(B, tb),)
    return pl.pallas_call(
        _unit_sphere_solve_kernel,
        out_shape=jax.ShapeDtypeStruct((B, D), x.dtype),
        grid=grid,
        in_specs=[pl.BlockSpec((tb, D), lambda i: (i, 0))],
        out_specs=pl.BlockSpec((tb, D), lambda i: (i, 0)),
        compiler_params=pltpu.CompilerParams(**cp_kwargs),
        **call_kwargs,
    )(x)


def _reference(x):
    xf = x.astype(jnp.float32)
    return (xf / jnp.linalg.norm(xf, axis=-1, keepdims=True)).astype(x.dtype)


if __name__ == "__main__":
    key = jax.random.PRNGKey(0)
    k1, k2, k3 = jax.random.split(key, 3)

    # 1) Small shape consistent with the module (single batch dim, hidden=32),
    #    forced through the Pallas kernel (single (B, D) block, D < 128 tail mask).
    B, D = 2, 32
    x_small = jax.random.normal(k1, (B, D), dtype=jnp.float32)
    y_small = jax.block_until_ready(
        declarative_layer_forward(x_small, force_kernel=True))
    assert y_small.shape == x_small.shape and y_small.dtype == x_small.dtype
    assert jnp.allclose(y_small, _reference(x_small), atol=1e-5, rtol=1e-5)

    # 2) Same small shape through the small-problem bypass path.
    y_bypass = jax.block_until_ready(declarative_layer_forward(x_small))
    assert jnp.allclose(y_bypass, _reference(x_small), atol=1e-5, rtol=1e-5)

    # 3) Non-128-aligned D (300) at a size above the bypass threshold: exercises
    #    the no-pad masked-tail path and the capacity/megacore tb derivation.
    B2, D2 = 512, 300
    x_big = jax.random.normal(k2, (B2, D2), dtype=jnp.float32)
    y_big = jax.block_until_ready(declarative_layer_forward(x_big))
    assert y_big.shape == x_big.shape and y_big.dtype == x_big.dtype
    assert jnp.allclose(y_big, _reference(x_big), atol=1e-5, rtol=1e-5)

    # 4) bf16 input: 16-sublane packing, halved block-byte target, f32 accumulate.
    B3, D3 = 64, 384
    x_bf16 = jax.random.normal(k3, (B3, D3), dtype=jnp.bfloat16)
    y_bf16 = jax.block_until_ready(
        declarative_layer_forward(x_bf16, force_kernel=True))
    assert y_bf16.shape == x_bf16.shape and y_bf16.dtype == x_bf16.dtype
    assert jnp.allclose(y_bf16.astype(jnp.float32),
                        _reference(x_bf16).astype(jnp.float32),
                        atol=2e-2, rtol=2e-2)

    print("KERNEL_OK")
</pallas_src>

<mosaic_0001>
module attributes {stable_mosaic.version = 11 : i64} {
  func.func @_unit_sphere_solve_kernel(%arg0: i32, %arg1: memref<2x32xf32, #tpu.memory_space<vmem>>, %arg2: memref<2x32xf32, #tpu.memory_space<vmem>>) attributes {dimension_semantics = [#tpu.dimension_semantics<parallel>], iteration_bounds = array<i64: 1>, scalar_prefetch = 0 : i64, scratch_operands = 0 : i64, tpu.core_type = #tpu.core_type<tc>, window_params = [{transform_indices = @transform_0, window_bounds = array<i64: 2, 32>}, {transform_indices = @transform_1, window_bounds = array<i64: 2, 32>}]} {
    %c0 = arith.constant 0 : index
    %c0_0 = arith.constant 0 : index
    %0 = vector.load %arg1[%c0, %c0_0] : memref<2x32xf32, #tpu.memory_space<vmem>>, vector<2x32xf32>
    %1 = arith.mulf %0, %0 : vector<2x32xf32>
    %cst = arith.constant dense<0.000000e+00> : vector<2xf32>
    %2 = vector.multi_reduction <add>, %1, %cst [1] : vector<2x32xf32> to vector<2xf32>
    %3 = vector.shape_cast %2 : vector<2xf32> to vector<2x1xf32>
    %4 = math.rsqrt %3 : vector<2x1xf32>
    %5 = vector.broadcast %4 : vector<2x1xf32> to vector<2x32xf32>
    %6 = arith.mulf %0, %5 : vector<2x32xf32>
    %c0_1 = arith.constant 0 : index
    %c0_2 = arith.constant 0 : index
    %7 = vector.load %arg2[%c0_1, %c0_2] : memref<2x32xf32, #tpu.memory_space<vmem>>, vector<2x32xf32>
    tpu.vector_store %arg2[%c0_1, %c0_2], %6 {strides = array<i32>} : memref<2x32xf32, #tpu.memory_space<vmem>>, vector<2x32xf32>,
    return
  }
  func.func @transform_0(%arg0: i32) -> (i32, i32) {
    %c0_i32 = arith.constant 0 : i32
    %c0_i32_0 = arith.constant 0 : i32
    return %arg0, %c0_i32 : i32, i32
  }
  func.func @transform_1(%arg0: i32) -> (i32, i32) {
    %c0_i32 = arith.constant 0 : i32
    %c0_i32_0 = arith.constant 0 : i32
    return %arg0, %c0_i32 : i32, i32
  }
}

</mosaic_0001>

<llo_original>
// kernel: tpu_custom_call.1
$region0: #{tpu_custom_call.1}
  #allocation0 [shape = 'u32[]', space=smem, size = 0x4, offset = 0x4, fixed_abs, tag = 'smem constant byte address 0x4 - core index']
  #allocation1 [shape = 'u32[144,128]{1,0:T(1,128)}', space=vmem, size = 0x12000, scoped, tag = 'internal scratch']
  %s0 = inlined_call_operand.hbm [shape: f32[2,32], index: 0, kind: input, shape index: {}]
  %s1 = inlined_call_operand.hbm [shape: f32[2,32], index: 1, kind: output, shape index: {}]
  %s2 = sld [smem:[#allocation0]]
  $region18: #{tpu_custom_call.1} parent=0
    _
  %s4 = ssub.s32 1, %s2
  %s5 = scalar_select 0, %s4, %s2
  $region1: #{tpu_custom_call.1} parent=0
    #allocation2 [shape = 'u8[1024]{0}', space=vmem, size = 0x400, scoped, tag = 'input window, operand 0, single buffered']
    #allocation3 [shape = 's32[1]{0}', space=sflag, size = 0x4, scoped, tag = 'scoped memory for tpu_custom_call.1']
    #allocation4 [shape = 's32[1]{0}', space=sflag, size = 0x4, scoped, tag = 'scoped memory for tpu_custom_call.1']
    #allocation5 [shape = 'u8[1024]{0}', space=vmem, size = 0x400, scoped, tag = 'output window, operand 0, single buffered']
    %6 = vsyncpa [#allocation3], 0
    %7 = vsyncpa [#allocation4], 0
    // Predicated region
    $region2: #{tpu_custom_call.1} parent=1 // pred_check
      _
    $region3: #{tpu_custom_call.1} parent=1 // pred_check_branch
      %9 = sbr.rel (0) target = $region5
    $region4: #{tpu_custom_call.1} parent=1 // pred_region
      %s11 = ssub.s32 32, 32
      %12 = vsyncadd [#allocation3], %s11
      %s14 = sshll.u32 [#allocation2], 4
      %s15 = int_to_ptr.vmem [resolvable:$true] %s14
      %17 = dma.hbm_to_vmem [thread:$0]  %s0, 32, %s15, [#allocation3]
    $region5: #{tpu_custom_call.1} parent=1 // pred_fallthru
      _
    // Predicated region
    $region6: #{tpu_custom_call.1} parent=1 // pred_check
      _
    $region7: #{tpu_custom_call.1} parent=1 // pred_check_branch
      %19 = sbr.rel (0) target = $region9
    $region8: #{tpu_custom_call.1} parent=1 // pred_region
      %20 = dma.done [#allocation3], 32
    $region9: #{tpu_custom_call.1} parent=1 // pred_fallthru
      _
    %v21 = vld [vmem:[#allocation2] sm:$0x3]
    %v22 = vmul.f32 %v21, %v21
    %vm23 = vcmask 254976
    %v24 = vsel %vm23, %v22, 0.0
    %25 = vadd.xlane.f32.xlu0 %v24
    %v26 = vpop.xlane.xlu0 %25
    %v27 = vrsqrt.pop %v26
    %v28 = vmul.f32 %v21, %v27
    %29 = vst.msk [vmem:[#allocation5] sm:$0x3] %vm23, %v28
    // Predicated region
    $region10: #{tpu_custom_call.1} parent=1 // pred_check
      _
    $region11: #{tpu_custom_call.1} parent=1 // pred_check_branch
      %31 = sbr.rel (0) target = $region13
    $region12: #{tpu_custom_call.1} parent=1 // pred_region
      %s33 = ssub.s32 32, 32
      %34 = vsyncadd [#allocation4], %s33
      %s36 = sshll.u32 [#allocation5], 4
      %s37 = int_to_ptr.vmem [resolvable:$true] %s36
      %39 = dma.vmem_to_hbm [thread:$0]  %s37, 32, %s1, [#allocation4]
    $region13: #{tpu_custom_call.1} parent=1 // pred_fallthru
      _
    // Predicated region
    $region14: #{tpu_custom_call.1} parent=1 // pred_check
      _
    $region15: #{tpu_custom_call.1} parent=1 // pred_check_branch
      %41 = sbr.rel (0) target = $region17
    $region16: #{tpu_custom_call.1} parent=1 // pred_region
      %42 = dma.done [#allocation4], 32
    $region17: #{tpu_custom_call.1} parent=1 // pred_fallthru
      _
    %43 = vsyncpa [#allocation3], 1
    %44 = vsyncpa [#allocation4], 1

</llo_original>
